<compile_context>
chip_gen: v7x
topology: tpu7x:2x2x1
jax: 0.10.0
libtpu: 0.0.40
codegen_flags: <defaults>
</compile_context>

<pallas_src>
import jax
import jax.numpy as jnp
from jax.experimental import pallas as pl
from jax.experimental.pallas import tpu as pltpu


def _round_up(a, m):
    return -(-a // m) * m


def _largest_divisor_leq(n, k):
    k = max(1, min(int(k), int(n)))
    while n % k:
        k -= 1
    return k


def _tpu_budgets():
    """Per-generation VMEM budgets.

    Returns (tile_pick_budget_bytes, vmem_limit_cap_bytes, num_tensorcores).
    v5e/v6e: 128 MiB VMEM, 1 TensorCore.  v7x: 64 MiB per TensorCore, 2 TCs.
    """
    vmem_cap = 128 << 20
    try:
        info = pltpu.get_tpu_info()
        vmem_cap = int(getattr(info, "vmem_capacity_bytes", vmem_cap)) or (128 << 20)
    except Exception:
        pass  # no TPU info available at trace time -> conservative default
    vmem_cap = max(32 << 20, min(vmem_cap, 256 << 20))
    pick_budget = (vmem_cap * 3) // 8   # 48 MiB on v5e/v6e, 24 MiB on v7x
    limit_cap = (vmem_cap * 5) // 8     # 80 MiB on v5e/v6e, 40 MiB on v7x
    num_cores = 2 if vmem_cap <= (64 << 20) else 1
    return pick_budget, limit_cap, num_cores


def _pick_tile_j(tb, I, j128, x_itemsize, vmem_budget_bytes, num_cores):
    """Largest lane-dense J tile (multiple of 128) that fits the VMEM budget."""
    I_pad = _round_up(I, 8)
    units_total = j128 // 128
    # Per-128-lane cost: double-buffered x block + out tile, plus the f32
    # accumulator slice used on the B-reduction path.
    per_unit = 2 * 128 * x_itemsize * (tb * I_pad + I_pad) + 128 * 4 * I_pad
    # Lane-padded f32 weight block (two buffers, worst case).
    fixed = 2 * tb * I_pad * 128 * 4
    max_units = max(1, (vmem_budget_bytes - fixed) // per_unit)
    units = int(min(max_units, units_total))

    # Prefer a divisor of round_up(J,128)/128 so wrapper padding is <=127 lanes
    # (avoids a full extra HBM pass over x from jnp.pad).
    d = _largest_divisor_leq(units_total, units)
    if d >= max(1, units // 2):
        units = d

    # Only on 2-TensorCore chips (v7x): give both cores work when a single
    # tile would otherwise cover all of J.  On v5e/v6e the grid is a serial
    # loop, so splitting is pure per-step overhead.
    if num_cores >= 2 and units >= units_total and units_total >= 2:
        half = (units_total + 1) // 2
        d = _largest_divisor_leq(units_total, half)
        units = d if d >= max(1, units_total // 4) else half

    return units * 128


def _transform_kernel_fullb(w_ref, x_ref, o_ref):
    # w_ref: (B, I, 1) f32  -- full weight, lane-broadcastable
    # x_ref: (B, I, TJ)     -- one J tile of x
    # o_ref: (I, TJ)        -- one J tile of the output
    B = x_ref.shape[0]
    # Unrolled accumulation over B (B <= 8 on this path): never materializes
    # the (B, I, TJ) product, keeping live vregs ~ I*TJ/1024 + a handful.
    acc = x_ref[0].astype(jnp.float32) * w_ref[0]
    for b in range(1, B):
        acc = acc + x_ref[b].astype(jnp.float32) * w_ref[b]
    o_ref[...] = acc.astype(o_ref.dtype)


def _transform_kernel_breduce(w_ref, x_ref, o_ref, acc_ref):
    # Grid = (J tiles, B chunks); B chunk axis is the innermost reduction.
    # w_ref: (TB, I, 1) f32, x_ref: (TB, I, TJ), o_ref: (I, TJ), acc_ref f32.
    bk = pl.program_id(1)

    @pl.when(bk == 0)
    def _():
        acc_ref[...] = jnp.zeros_like(acc_ref)

    TB = x_ref.shape[0]
    acc = acc_ref[...]
    for b in range(TB):  # TB <= 8, short static unroll
        acc = acc + x_ref[b].astype(jnp.float32) * w_ref[b]
    acc_ref[...] = acc

    @pl.when(bk == pl.num_programs(1) - 1)
    def _():
        o_ref[...] = acc_ref[...].astype(o_ref.dtype)


def transform_forward(x, weight, *, tile_j=None):
    """x: (B, I, J), weight: (B, I) -> (I, J), out[i,j] = sum_b x[b,i,j]*w[b,i]."""
    B, I, J = x.shape
    assert weight.shape == (B, I)
    itemsize = jnp.dtype(x.dtype).itemsize

    pick_budget, limit_cap, num_cores = _tpu_budgets()

    # Chunk B when it is large: keeps the static unroll short and keeps J
    # tiles lane-dense even on v7x's smaller VMEM.
    tb = B if B <= 8 else _largest_divisor_leq(B, 8)
    breduce = tb != B

    j128 = _round_up(J, 128)
    if tile_j is None:
        tile_j = _pick_tile_j(tb, I, j128, itemsize, pick_budget, num_cores)
    else:
        tile_j = _round_up(max(int(tile_j), 128), 128)

    # Pad only what the tiling needs (<=127 lanes in the common divisor case).
    J_pad = _round_up(J, tile_j)
    x_p = x if J_pad == J else jnp.pad(x, ((0, 0), (0, 0), (0, J_pad - J)))

    # Weight as (B, I, 1) f32: cast once here; in-kernel broadcast is a pure
    # lane broadcast (I stays on sublanes, matching x's tile layout).
    # (A single-buffered weight block via pipeline_mode=pl.Buffered(1) would
    # save one ~tb*I*512-byte buffer; negligible here, so left at default.)
    w3 = weight.astype(jnp.float32).reshape(B, I, 1)

    I_pad = _round_up(I, 8)
    n_jt = J_pad // tile_j

    # Scoped-VMEM request derived from the actual double-buffered footprint,
    # with ~25% headroom, capped per generation (<=40 MiB on v7x).
    footprint = (2 * (tb * I_pad + I_pad) * tile_j * itemsize
                 + 2 * tb * I_pad * 128 * 4
                 + (I_pad * tile_j * 4 if breduce else 0))
    vmem_limit = int(min(limit_cap, max(16 << 20, footprint * 5 // 4 + (2 << 20))))

    cost = pl.CostEstimate(
        flops=2 * B * I * J,
        transcendentals=0,
        bytes_accessed=(B * I * J + B * I + I * J) * itemsize,
    )

    if not breduce:
        grid = (n_jt,)
        in_specs = [
            pl.BlockSpec((B, I, 1), lambda j: (0, 0, 0)),          # tiny, constant
            pl.BlockSpec((B, I, tile_j), lambda j: (0, 0, j)),     # lane-dense x tile
        ]
        out_specs = pl.BlockSpec((I, tile_j), lambda j: (0, j))
        scratch_shapes = []
        kernel = _transform_kernel_fullb
        dims = ("parallel",)
    else:
        nb = B // tb
        grid = (n_jt, nb)  # reduction axis (B chunks) innermost
        in_specs = [
            pl.BlockSpec((tb, I, 1), lambda j, b: (b, 0, 0)),
            pl.BlockSpec((tb, I, tile_j), lambda j, b: (b, 0, j)),
        ]
        out_specs = pl.BlockSpec((I, tile_j), lambda j, b: (0, j))
        scratch_shapes = [pltpu.VMEM((I, tile_j), jnp.float32)]
        kernel = _transform_kernel_breduce
        dims = ("parallel", "arbitrary")

    out_p = pl.pallas_call(
        kernel,
        out_shape=jax.ShapeDtypeStruct((I, J_pad), x.dtype),
        grid_spec=pltpu.PrefetchScalarGridSpec(
            num_scalar_prefetch=0,
            grid=grid,
            in_specs=in_specs,
            out_specs=out_specs,
            scratch_shapes=scratch_shapes,
        ),
        compiler_params=pltpu.CompilerParams(
            dimension_semantics=dims,
            vmem_limit_bytes=vmem_limit,
        ),
        cost_estimate=cost,
    )(w3, x_p)

    # Padded output columns are zeros (x was zero-padded); slice them off.
    return out_p if J_pad == J else out_p[:, :J]


if __name__ == "__main__":
    key = jax.random.PRNGKey(0)

    # 1) Module-default shapes: n=2, token_size=32, input_dim=2048.
    n, token_size, input_dim = 2, 32, 2048
    k1, k2, k3 = jax.random.split(key, 3)
    x = jax.random.normal(k1, (n, token_size, input_dim), dtype=jnp.float32)
    # Deterministic init matching nn.Parameter(torch.ones(n, token_size)).
    weight = jnp.ones((n, token_size), dtype=jnp.float32)

    out = jax.block_until_ready(transform_forward(x, weight))
    ref = jnp.einsum("bij,bi->ij", x, weight)
    assert out.shape == (token_size, input_dim)
    assert jnp.allclose(out, ref, atol=1e-4, rtol=1e-5), "mismatch vs reference (default shapes)"

    # 2) Larger-B / non-128 J case: exercises the B-reduction grid axis,
    #    the f32 accumulator, and the <=127-lane padding path.
    B2, I2, J2 = 16, 8, 300
    x2 = jax.random.normal(k2, (B2, I2, J2), dtype=jnp.float32)
    w2 = jax.random.normal(k3, (B2, I2), dtype=jnp.float32)
    out2 = jax.block_until_ready(transform_forward(x2, w2))
    ref2 = jnp.einsum("bij,bi->ij", x2, w2)
    assert out2.shape == (I2, J2)
    assert jnp.allclose(out2, ref2, atol=1e-4, rtol=1e-5), "mismatch vs reference (B-reduce path)"

    print("KERNEL_OK")
</pallas_src>

<mosaic_0001>
module attributes {stable_mosaic.version = 11 : i64} {
  func.func @_transform_kernel_fullb(%arg0: i32, %arg1: memref<2x32x1xf32, #tpu.memory_space<vmem>>, %arg2: memref<2x32x2048xf32, #tpu.memory_space<vmem>>, %arg3: memref<32x2048xf32, #tpu.memory_space<vmem>>) attributes {dimension_semantics = [#tpu.dimension_semantics<parallel>], iteration_bounds = array<i64: 1>, scalar_prefetch = 0 : i64, scratch_operands = 0 : i64, tpu.core_type = #tpu.core_type<tc>, window_params = [{pipeline_mode = #tpu.pipeline_mode<synchronous>, transform_indices = @transform_0, window_bounds = array<i64: 2, 32, 1>}, {transform_indices = @transform_1, window_bounds = array<i64: 2, 32, 2048>}, {transform_indices = @transform_2, window_bounds = array<i64: 32, 2048>}]} {
    %c0 = arith.constant 0 : index
    %c0_0 = arith.constant 0 : index
    %c0_1 = arith.constant 0 : index
    %0 = vector.load %arg2[%c0, %c0_0, %c0_1] : memref<2x32x2048xf32, #tpu.memory_space<vmem>>, vector<1x32x2048xf32>
    %1 = vector.shape_cast %0 : vector<1x32x2048xf32> to vector<32x2048xf32>
    %c0_2 = arith.constant 0 : index
    %c0_3 = arith.constant 0 : index
    %c0_4 = arith.constant 0 : index
    %2 = vector.load %arg1[%c0_2, %c0_3, %c0_4] : memref<2x32x1xf32, #tpu.memory_space<vmem>>, vector<1x32x1xf32>
    %3 = vector.shape_cast %2 : vector<1x32x1xf32> to vector<32x1xf32>
    %4 = vector.broadcast %3 : vector<32x1xf32> to vector<32x2048xf32>
    %5 = arith.mulf %1, %4 : vector<32x2048xf32>
    %c1 = arith.constant 1 : index
    %c0_5 = arith.constant 0 : index
    %c0_6 = arith.constant 0 : index
    %6 = vector.load %arg2[%c1, %c0_5, %c0_6] : memref<2x32x2048xf32, #tpu.memory_space<vmem>>, vector<1x32x2048xf32>
    %7 = vector.shape_cast %6 : vector<1x32x2048xf32> to vector<32x2048xf32>
    %c1_7 = arith.constant 1 : index
    %c0_8 = arith.constant 0 : index
    %c0_9 = arith.constant 0 : index
    %8 = vector.load %arg1[%c1_7, %c0_8, %c0_9] : memref<2x32x1xf32, #tpu.memory_space<vmem>>, vector<1x32x1xf32>
    %9 = vector.shape_cast %8 : vector<1x32x1xf32> to vector<32x1xf32>
    %10 = vector.broadcast %9 : vector<32x1xf32> to vector<32x2048xf32>
    %11 = arith.mulf %7, %10 : vector<32x2048xf32>
    %12 = arith.addf %5, %11 : vector<32x2048xf32>
    %c0_10 = arith.constant 0 : index
    %c0_11 = arith.constant 0 : index
    %13 = vector.load %arg3[%c0_10, %c0_11] : memref<32x2048xf32, #tpu.memory_space<vmem>>, vector<32x2048xf32>
    tpu.vector_store %arg3[%c0_10, %c0_11], %12 {strides = array<i32>} : memref<32x2048xf32, #tpu.memory_space<vmem>>, vector<32x2048xf32>,
    return
  }
  func.func @transform_0(%arg0: i32) -> (i32, i32, i32) {
    %c0_i32 = arith.constant 0 : i32
    %c0_i32_0 = arith.constant 0 : i32
    %c0_i32_1 = arith.constant 0 : i32
    %c0_i32_2 = arith.constant 0 : i32
    return %c0_i32, %c0_i32_0, %c0_i32_1 : i32, i32, i32
  }
  func.func @transform_1(%arg0: i32) -> (i32, i32, i32) {
    %c0_i32 = arith.constant 0 : i32
    %c0_i32_0 = arith.constant 0 : i32
    %c0_i32_1 = arith.constant 0 : i32
    return %c0_i32, %c0_i32_0, %arg0 : i32, i32, i32
  }
  func.func @transform_2(%arg0: i32) -> (i32, i32) {
    %c0_i32 = arith.constant 0 : i32
    %c0_i32_0 = arith.constant 0 : i32
    return %c0_i32, %arg0 : i32, i32
  }
}

</mosaic_0001>

<llo_original>
// kernel: tpu_custom_call.1
$region0: #{tpu_custom_call.1}
  #allocation0 [shape = 'u32[]', space=smem, size = 0x4, offset = 0x4, fixed_abs, tag = 'smem constant byte address 0x4 - core index']
  #allocation1 [shape = 'u32[144,128]{1,0:T(1,128)}', space=vmem, size = 0x12000, scoped, tag = 'internal scratch']
  %s0 = inlined_call_operand.vmem [shape: f32[2,32,1], index: 0, kind: input, shape index: {}]
  %s1 = inlined_call_operand.hbm [shape: f32[2,32,2048], index: 1, kind: input, shape index: {}]
  %s2 = inlined_call_operand.hbm [shape: f32[32,2048], index: 2, kind: output, shape index: {}]
  %s3 = sld [smem:[#allocation0]]
  $region22: #{tpu_custom_call.1} parent=0
    _
  %s5 = ssub.s32 1, %s3
  %s6 = scalar_select 0, %s5, %s3
  $region1: #{tpu_custom_call.1} parent=0
    #allocation2 [shape = 'u8[524288]{0}', space=vmem, size = 0x80000, scoped, tag = 'input window, operand 1, single buffered']
    #allocation3 [shape = 's32[1]{0}', space=sflag, size = 0x4, scoped, tag = 'scoped memory for tpu_custom_call.1']
    #allocation4 [shape = 's32[1]{0}', space=sflag, size = 0x4, scoped, tag = 'scoped memory for tpu_custom_call.1']
    #allocation5 [shape = 'u8[262144]{0}', space=vmem, size = 0x40000, scoped, tag = 'output window, operand 0, single buffered']
    %7 = vsyncpa [#allocation3], 0
    %8 = vsyncpa [#allocation4], 0
    // Predicated region
    $region2: #{tpu_custom_call.1} parent=1 // pred_check
      _
    $region3: #{tpu_custom_call.1} parent=1 // pred_check_branch
      %10 = sbr.rel (0) target = $region5
    $region4: #{tpu_custom_call.1} parent=1 // pred_region
      _
    $region5: #{tpu_custom_call.1} parent=1 // pred_fallthru
      _
    // Predicated region
    $region6: #{tpu_custom_call.1} parent=1 // pred_check
      _
    $region7: #{tpu_custom_call.1} parent=1 // pred_check_branch
      %12 = sbr.rel (0) target = $region9
    $region8: #{tpu_custom_call.1} parent=1 // pred_region
      %s14 = ssub.s32 16384, 16384
      %15 = vsyncadd [#allocation3], %s14
      %s16 = sshll.u32 [#allocation2], 4
      %s17 = int_to_ptr.vmem [resolvable:$true] %s16
      %22 = dma.hbm_to_vmem [thread:$0]  %s1, 16384, %s17, [#allocation3], 2048, 2048, 128
    $region9: #{tpu_custom_call.1} parent=1 // pred_fallthru
      _
    // Predicated region
    $region10: #{tpu_custom_call.1} parent=1 // pred_check
      _
    $region11: #{tpu_custom_call.1} parent=1 // pred_check_branch
      %24 = sbr.rel (0) target = $region13
    $region12: #{tpu_custom_call.1} parent=1 // pred_region
      %25 = dma.done [#allocation3], 16384
    $region13: #{tpu_custom_call.1} parent=1 // pred_fallthru
      _
    %v26 = vld [vmem:[#allocation2] sm:$0xff]
    %v27 = vld [vmem:[#allocation2 + $0x8] sm:$0xff]
    %v28 = vld [vmem:[#allocation2 + $0x10] sm:$0xff]
    %v29 = vld [vmem:[#allocation2 + $0x18] sm:$0xff]
    %v30 = vld [vmem:[#allocation2 + $0x20] sm:$0xff]
    %v31 = vld [vmem:[#allocation2 + $0x28] sm:$0xff]
    %v32 = vld [vmem:[#allocation2 + $0x30] sm:$0xff]
    %v33 = vld [vmem:[#allocation2 + $0x38] sm:$0xff]
    %v34 = vld [vmem:[#allocation2 + $0x40] sm:$0xff]
    %v35 = vld [vmem:[#allocation2 + $0x48] sm:$0xff]
    %v36 = vld [vmem:[#allocation2 + $0x50] sm:$0xff]
    %v37 = vld [vmem:[#allocation2 + $0x58] sm:$0xff]
    %v38 = vld [vmem:[#allocation2 + $0x60] sm:$0xff]
    %v39 = vld [vmem:[#allocation2 + $0x68] sm:$0xff]
    %v40 = vld [vmem:[#allocation2 + $0x70] sm:$0xff]
    %v41 = vld [vmem:[#allocation2 + $0x78] sm:$0xff]
    %v42 = vld [vmem:[#allocation2 + $0x80] sm:$0xff]
    %v43 = vld [vmem:[#allocation2 + $0x88] sm:$0xff]
    %v44 = vld [vmem:[#allocation2 + $0x90] sm:$0xff]
    %v45 = vld [vmem:[#allocation2 + $0x98] sm:$0xff]
    %v46 = vld [vmem:[#allocation2 + $0xa0] sm:$0xff]
    %v47 = vld [vmem:[#allocation2 + $0xa8] sm:$0xff]
    %v48 = vld [vmem:[#allocation2 + $0xb0] sm:$0xff]
    %v49 = vld [vmem:[#allocation2 + $0xb8] sm:$0xff]
    %v50 = vld [vmem:[#allocation2 + $0xc0] sm:$0xff]
    %v51 = vld [vmem:[#allocation2 + $0xc8] sm:$0xff]
    %v52 = vld [vmem:[#allocation2 + $0xd0] sm:$0xff]
    %v53 = vld [vmem:[#allocation2 + $0xd8] sm:$0xff]
    %v54 = vld [vmem:[#allocation2 + $0xe0] sm:$0xff]
    %v55 = vld [vmem:[#allocation2 + $0xe8] sm:$0xff]
    %v56 = vld [vmem:[#allocation2 + $0xf0] sm:$0xff]
    %v57 = vld [vmem:[#allocation2 + $0xf8] sm:$0xff]
    %v58 = vld [vmem:[#allocation2 + $0x100] sm:$0xff]
    %v59 = vld [vmem:[#allocation2 + $0x108] sm:$0xff]
    %v60 = vld [vmem:[#allocation2 + $0x110] sm:$0xff]
    %v61 = vld [vmem:[#allocation2 + $0x118] sm:$0xff]
    %v62 = vld [vmem:[#allocation2 + $0x120] sm:$0xff]
    %v63 = vld [vmem:[#allocation2 + $0x128] sm:$0xff]
    %v64 = vld [vmem:[#allocation2 + $0x130] sm:$0xff]
    %v65 = vld [vmem:[#allocation2 + $0x138] sm:$0xff]
    %v66 = vld [vmem:[#allocation2 + $0x140] sm:$0xff]
    %v67 = vld [vmem:[#allocation2 + $0x148] sm:$0xff]
    %v68 = vld [vmem:[#allocation2 + $0x150] sm:$0xff]
    %v69 = vld [vmem:[#allocation2 + $0x158] sm:$0xff]
    %v70 = vld [vmem:[#allocation2 + $0x160] sm:$0xff]
    %v71 = vld [vmem:[#allocation2 + $0x168] sm:$0xff]
    %v72 = vld [vmem:[#allocation2 + $0x170] sm:$0xff]
    %v73 = vld [vmem:[#allocation2 + $0x178] sm:$0xff]
    %v74 = vld [vmem:[#allocation2 + $0x180] sm:$0xff]
    %v75 = vld [vmem:[#allocation2 + $0x188] sm:$0xff]
    %v76 = vld [vmem:[#allocation2 + $0x190] sm:$0xff]
    %v77 = vld [vmem:[#allocation2 + $0x198] sm:$0xff]
    %v78 = vld [vmem:[#allocation2 + $0x1a0] sm:$0xff]
    %v79 = vld [vmem:[#allocation2 + $0x1a8] sm:$0xff]
    %v80 = vld [vmem:[#allocation2 + $0x1b0] sm:$0xff]
    %v81 = vld [vmem:[#allocation2 + $0x1b8] sm:$0xff]
    %v82 = vld [vmem:[#allocation2 + $0x1c0] sm:$0xff]
    %v83 = vld [vmem:[#allocation2 + $0x1c8] sm:$0xff]
    %v84 = vld [vmem:[#allocation2 + $0x1d0] sm:$0xff]
    %v85 = vld [vmem:[#allocation2 + $0x1d8] sm:$0xff]
    %v86 = vld [vmem:[#allocation2 + $0x1e0] sm:$0xff]
    %v87 = vld [vmem:[#allocation2 + $0x1e8] sm:$0xff]
    %v88 = vld [vmem:[#allocation2 + $0x1f0] sm:$0xff]
    %v89 = vld [vmem:[#allocation2 + $0x1f8] sm:$0xff]
    %v90 = vld [vmem:[%s0] sm:$0xff]
    %v91 = vld [vmem:[%s0 + $0x8] sm:$0xff]
    %v92 = vld [vmem:[%s0 + $0x10] sm:$0xff]
    %v93 = vld [vmem:[%s0 + $0x18] sm:$0xff]
    %95 = vset.pattern.permute.xlu0 0
    %96 = vperm.xlu0 %95, %v90
    %v97 = vpop.permute.xlu0 %96
    %100 = vset.pattern.permute.xlu0 0
    %101 = vperm.xlu0 %100, %v91
    %v102 = vpop.permute.xlu0 %101
    %105 = vset.pattern.permute.xlu0 0
    %106 = vperm.xlu0 %105, %v92
    %v107 = vpop.permute.xlu0 %106
    %110 = vset.pattern.permute.xlu0 0
    %111 = vperm.xlu0 %110, %v93
    %v112 = vpop.permute.xlu0 %111
    %v114 = vmul.f32 %v26, %v97
    %v115 = vmul.f32 %v27, %v97
    %v116 = vmul.f32 %v28, %v97
    %v117 = vmul.f32 %v29, %v97
    %v118 = vmul.f32 %v30, %v97
    %v119 = vmul.f32 %v31, %v97
    %v120 = vmul.f32 %v32, %v97
    %v121 = vmul.f32 %v33, %v97
    %v122 = vmul.f32 %v34, %v97
    %v123 = vmul.f32 %v35, %v97
    %v124 = vmul.f32 %v36, %v97
    %v125 = vmul.f32 %v37, %v97
    %v126 = vmul.f32 %v38, %v97
    %v127 = vmul.f32 %v39, %v97
    %v128 = vmul.f32 %v40, %v97
    %v129 = vmul.f32 %v41, %v97
    %v130 = vmul.f32 %v42, %v102
    %v131 = vmul.f32 %v43, %v102
    %v132 = vmul.f32 %v44, %v102
    %v133 = vmul.f32 %v45, %v102
    %v134 = vmul.f32 %v46, %v102
    %v135 = vmul.f32 %v47, %v102
    %v136 = vmul.f32 %v48, %v102
    %v137 = vmul.f32 %v49, %v102
    %v138 = vmul.f32 %v50, %v102
    %v139 = vmul.f32 %v51, %v102
    %v140 = vmul.f32 %v52, %v102
    %v141 = vmul.f32 %v53, %v102
    %v142 = vmul.f32 %v54, %v102
    %v143 = vmul.f32 %v55, %v102
    %v144 = vmul.f32 %v56, %v102
    %v145 = vmul.f32 %v57, %v102
    %v146 = vmul.f32 %v58, %v107
    %v147 = vmul.f32 %v59, %v107
    %v148 = vmul.f32 %v60, %v107
    %v149 = vmul.f32 %v61, %v107
    %v150 = vmul.f32 %v62, %v107
    %v151 = vmul.f32 %v63, %v107
    %v152 = vmul.f32 %v64, %v107
    %v153 = vmul.f32 %v65, %v107
    %v154 = vmul.f32 %v66, %v107
    %v155 = vmul.f32 %v67, %v107
    %v156 = vmul.f32 %v68, %v107
    %v157 = vmul.f32 %v69, %v107
    %v158 = vmul.f32 %v70, %v107
    %v159 = vmul.f32 %v71, %v107
    %v160 = vmul.f32 %v72, %v107
    %v161 = vmul.f32 %v73, %v107
    %v162 = vmul.f32 %v74, %v112
    %v163 = vmul.f32 %v75, %v112
    %v164 = vmul.f32 %v76, %v112
    %v165 = vmul.f32 %v77, %v112
    %v166 = vmul.f32 %v78, %v112
    %v167 = vmul.f32 %v79, %v112
    %v168 = vmul.f32 %v80, %v112
    %v169 = vmul.f32 %v81, %v112
    %v170 = vmul.f32 %v82, %v112
    %v171 = vmul.f32 %v83, %v112
    %v172 = vmul.f32 %v84, %v112
    %v173 = vmul.f32 %v85, %v112
    %v174 = vmul.f32 %v86, %v112
    %v175 = vmul.f32 %v87, %v112
    %v176 = vmul.f32 %v88, %v112
    %v177 = vmul.f32 %v89, %v112
    %s178 = scalar_lea.vmem [#allocation2], 512
    %v179 = vld [vmem:[%s178] sm:$0xff]
    %v180 = vld [vmem:[%s178 + $0x8] sm:$0xff]
    %v181 = vld [vmem:[%s178 + $0x10] sm:$0xff]
    %v182 = vld [vmem:[%s178 + $0x18] sm:$0xff]
    %v183 = vld [vmem:[%s178 + $0x20] sm:$0xff]
    %v184 = vld [vmem:[%s178 + $0x28] sm:$0xff]
    %v185 = vld [vmem:[%s178 + $0x30] sm:$0xff]
    %v186 = vld [vmem:[%s178 + $0x38] sm:$0xff]
    %v187 = vld [vmem:[%s178 + $0x40] sm:$0xff]
    %v188 = vld [vmem:[%s178 + $0x48] sm:$0xff]
    %v189 = vld [vmem:[%s178 + $0x50] sm:$0xff]
    %v190 = vld [vmem:[%s178 + $0x58] sm:$0xff]
    %v191 = vld [vmem:[%s178 + $0x60] sm:$0xff]
    %v192 = vld [vmem:[%s178 + $0x68] sm:$0xff]
    %v193 = vld [vmem:[%s178 + $0x70] sm:$0xff]
    %v194 = vld [vmem:[%s178 + $0x78] sm:$0xff]
    %v195 = vld [vmem:[%s178 + $0x80] sm:$0xff]
    %v196 = vld [vmem:[%s178 + $0x88] sm:$0xff]
    %v197 = vld [vmem:[%s178 + $0x90] sm:$0xff]
    %v198 = vld [vmem:[%s178 + $0x98] sm:$0xff]
    %v199 = vld [vmem:[%s178 + $0xa0] sm:$0xff]
    %v200 = vld [vmem:[%s178 + $0xa8] sm:$0xff]
    %v201 = vld [vmem:[%s178 + $0xb0] sm:$0xff]
    %v202 = vld [vmem:[%s178 + $0xb8] sm:$0xff]
    %v203 = vld [vmem:[%s178 + $0xc0] sm:$0xff]
    %v204 = vld [vmem:[%s178 + $0xc8] sm:$0xff]
    %v205 = vld [vmem:[%s178 + $0xd0] sm:$0xff]
    %v206 = vld [vmem:[%s178 + $0xd8] sm:$0xff]
    %v207 = vld [vmem:[%s178 + $0xe0] sm:$0xff]
    %v208 = vld [vmem:[%s178 + $0xe8] sm:$0xff]
    %v209 = vld [vmem:[%s178 + $0xf0] sm:$0xff]
    %v210 = vld [vmem:[%s178 + $0xf8] sm:$0xff]
    %v211 = vld [vmem:[%s178 + $0x100] sm:$0xff]
    %v212 = vld [vmem:[%s178 + $0x108] sm:$0xff]
    %v213 = vld [vmem:[%s178 + $0x110] sm:$0xff]
    %v214 = vld [vmem:[%s178 + $0x118] sm:$0xff]
    %v215 = vld [vmem:[%s178 + $0x120] sm:$0xff]
    %v216 = vld [vmem:[%s178 + $0x128] sm:$0xff]
    %v217 = vld [vmem:[%s178 + $0x130] sm:$0xff]
    %v218 = vld [vmem:[%s178 + $0x138] sm:$0xff]
    %v219 = vld [vmem:[%s178 + $0x140] sm:$0xff]
    %v220 = vld [vmem:[%s178 + $0x148] sm:$0xff]
    %v221 = vld [vmem:[%s178 + $0x150] sm:$0xff]
    %v222 = vld [vmem:[%s178 + $0x158] sm:$0xff]
    %v223 = vld [vmem:[%s178 + $0x160] sm:$0xff]
    %v224 = vld [vmem:[%s178 + $0x168] sm:$0xff]
    %v225 = vld [vmem:[%s178 + $0x170] sm:$0xff]
    %v226 = vld [vmem:[%s178 + $0x178] sm:$0xff]
    %v227 = vld [vmem:[%s178 + $0x180] sm:$0xff]
    %v228 = vld [vmem:[%s178 + $0x188] sm:$0xff]
    %v229 = vld [vmem:[%s178 + $0x190] sm:$0xff]
    %v230 = vld [vmem:[%s178 + $0x198] sm:$0xff]
    %v231 = vld [vmem:[%s178 + $0x1a0] sm:$0xff]
    %v232 = vld [vmem:[%s178 + $0x1a8] sm:$0xff]
    %v233 = vld [vmem:[%s178 + $0x1b0] sm:$0xff]
    %v234 = vld [vmem:[%s178 + $0x1b8] sm:$0xff]
    %v235 = vld [vmem:[%s178 + $0x1c0] sm:$0xff]
    %v236 = vld [vmem:[%s178 + $0x1c8] sm:$0xff]
    %v237 = vld [vmem:[%s178 + $0x1d0] sm:$0xff]
    %v238 = vld [vmem:[%s178 + $0x1d8] sm:$0xff]
    %v239 = vld [vmem:[%s178 + $0x1e0] sm:$0xff]
    %v240 = vld [vmem:[%s178 + $0x1e8] sm:$0xff]
    %v241 = vld [vmem:[%s178 + $0x1f0] sm:$0xff]
    %v242 = vld [vmem:[%s178 + $0x1f8] sm:$0xff]
    %s243 = scalar_lea.vmem %s0, 32
    %v244 = vld [vmem:[%s243] sm:$0xff]
    %v245 = vld [vmem:[%s243 + $0x8] sm:$0xff]
    %v246 = vld [vmem:[%s243 + $0x10] sm:$0xff]
    %v247 = vld [vmem:[%s243 + $0x18] sm:$0xff]
    %249 = vset.pattern.permute.xlu0 0
    %250 = vperm.xlu0 %249, %v244
    %v251 = vpop.permute.xlu0 %250
    %254 = vset.pattern.permute.xlu0 0
    %255 = vperm.xlu0 %254, %v245
    %v256 = vpop.permute.xlu0 %255
    %259 = vset.pattern.permute.xlu0 0
    %260 = vperm.xlu0 %259, %v246
    %v261 = vpop.permute.xlu0 %260
    %264 = vset.pattern.permute.xlu0 0
    %265 = vperm.xlu0 %264, %v247
    %v266 = vpop.permute.xlu0 %265
    %v268 = vmul.f32 %v179, %v251
    %v269 = vmul.f32 %v180, %v251
    %v270 = vmul.f32 %v181, %v251
    %v271 = vmul.f32 %v182, %v251
    %v272 = vmul.f32 %v183, %v251
    %v273 = vmul.f32 %v184, %v251
    %v274 = vmul.f32 %v185, %v251
    %v275 = vmul.f32 %v186, %v251
    %v276 = vmul.f32 %v187, %v251
    %v277 = vmul.f32 %v188, %v251
    %v278 = vmul.f32 %v189, %v251
    %v279 = vmul.f32 %v190, %v251
    %v280 = vmul.f32 %v191, %v251
    %v281 = vmul.f32 %v192, %v251
    %v282 = vmul.f32 %v193, %v251
    %v283 = vmul.f32 %v194, %v251
    %v284 = vmul.f32 %v195, %v256
    %v285 = vmul.f32 %v196, %v256
    %v286 = vmul.f32 %v197, %v256
    %v287 = vmul.f32 %v198, %v256
    %v288 = vmul.f32 %v199, %v256
    %v289 = vmul.f32 %v200, %v256
    %v290 = vmul.f32 %v201, %v256
    %v291 = vmul.f32 %v202, %v256
    %v292 = vmul.f32 %v203, %v256
    %v293 = vmul.f32 %v204, %v256
    %v294 = vmul.f32 %v205, %v256
    %v295 = vmul.f32 %v206, %v256
    %v296 = vmul.f32 %v207, %v256
    %v297 = vmul.f32 %v208, %v256
    %v298 = vmul.f32 %v209, %v256
    %v299 = vmul.f32 %v210, %v256
    %v300 = vmul.f32 %v211, %v261
    %v301 = vmul.f32 %v212, %v261
    %v302 = vmul.f32 %v213, %v261
    %v303 = vmul.f32 %v214, %v261
    %v304 = vmul.f32 %v215, %v261
    %v305 = vmul.f32 %v216, %v261
    %v306 = vmul.f32 %v217, %v261
    %v307 = vmul.f32 %v218, %v261
    %v308 = vmul.f32 %v219, %v261
    %v309 = vmul.f32 %v220, %v261
    %v310 = vmul.f32 %v221, %v261
    %v311 = vmul.f32 %v222, %v261
    %v312 = vmul.f32 %v223, %v261
    %v313 = vmul.f32 %v224, %v261
    %v314 = vmul.f32 %v225, %v261
    %v315 = vmul.f32 %v226, %v261
    %v316 = vmul.f32 %v227, %v266
    %v317 = vmul.f32 %v228, %v266
    %v318 = vmul.f32 %v229, %v266
    %v319 = vmul.f32 %v230, %v266
    %v320 = vmul.f32 %v231, %v266
    %v321 = vmul.f32 %v232, %v266
    %v322 = vmul.f32 %v233, %v266
    %v323 = vmul.f32 %v234, %v266
    %v324 = vmul.f32 %v235, %v266
    %v325 = vmul.f32 %v236, %v266
    %v326 = vmul.f32 %v237, %v266
    %v327 = vmul.f32 %v238, %v266
    %v328 = vmul.f32 %v239, %v266
    %v329 = vmul.f32 %v240, %v266
    %v330 = vmul.f32 %v241, %v266
    %v331 = vmul.f32 %v242, %v266
    %v332 = vadd.f32 %v114, %v268
    %v333 = vadd.f32 %v115, %v269
    %v334 = vadd.f32 %v116, %v270
    %v335 = vadd.f32 %v117, %v271
    %v336 = vadd.f32 %v118, %v272
    %v337 = vadd.f32 %v119, %v273
    %v338 = vadd.f32 %v120, %v274
    %v339 = vadd.f32 %v121, %v275
    %v340 = vadd.f32 %v122, %v276
    %v341 = vadd.f32 %v123, %v277
    %v342 = vadd.f32 %v124, %v278
    %v343 = vadd.f32 %v125, %v279
    %v344 = vadd.f32 %v126, %v280
    %v345 = vadd.f32 %v127, %v281
    %v346 = vadd.f32 %v128, %v282
    %v347 = vadd.f32 %v129, %v283
    %v348 = vadd.f32 %v130, %v284
    %v349 = vadd.f32 %v131, %v285
    %v350 = vadd.f32 %v132, %v286
    %v351 = vadd.f32 %v133, %v287
    %v352 = vadd.f32 %v134, %v288
    %v353 = vadd.f32 %v135, %v289
    %v354 = vadd.f32 %v136, %v290
    %v355 = vadd.f32 %v137, %v291
    %v356 = vadd.f32 %v138, %v292
    %v357 = vadd.f32 %v139, %v293
    %v358 = vadd.f32 %v140, %v294
    %v359 = vadd.f32 %v141, %v295
    %v360 = vadd.f32 %v142, %v296
    %v361 = vadd.f32 %v143, %v297
    %v362 = vadd.f32 %v144, %v298
    %v363 = vadd.f32 %v145, %v299
    %v364 = vadd.f32 %v146, %v300
    %v365 = vadd.f32 %v147, %v301
    %v366 = vadd.f32 %v148, %v302
    %v367 = vadd.f32 %v149, %v303
    %v368 = vadd.f32 %v150, %v304
    %v369 = vadd.f32 %v151, %v305
    %v370 = vadd.f32 %v152, %v306
    %v371 = vadd.f32 %v153, %v307
    %v372 = vadd.f32 %v154, %v308
    %v373 = vadd.f32 %v155, %v309
    %v374 = vadd.f32 %v156, %v310
    %v375 = vadd.f32 %v157, %v311
    %v376 = vadd.f32 %v158, %v312
    %v377 = vadd.f32 %v159, %v313
    %v378 = vadd.f32 %v160, %v314
    %v379 = vadd.f32 %v161, %v315
    %v380 = vadd.f32 %v162, %v316
    %v381 = vadd.f32 %v163, %v317
    %v382 = vadd.f32 %v164, %v318
    %v383 = vadd.f32 %v165, %v319
    %v384 = vadd.f32 %v166, %v320
    %v385 = vadd.f32 %v167, %v321
    %v386 = vadd.f32 %v168, %v322
    %v387 = vadd.f32 %v169, %v323
    %v388 = vadd.f32 %v170, %v324
    %v389 = vadd.f32 %v171, %v325
    %v390 = vadd.f32 %v172, %v326
    %v391 = vadd.f32 %v173, %v327
    %v392 = vadd.f32 %v174, %v328
    %v393 = vadd.f32 %v175, %v329
    %v394 = vadd.f32 %v176, %v330
    %v395 = vadd.f32 %v177, %v331
    %396 = vst [vmem:[#allocation5] sm:$0xff] %v332
    %397 = vst [vmem:[#allocation5 + $0x8] sm:$0xff] %v333
    %398 = vst [vmem:[#allocation5 + $0x10] sm:$0xff] %v334
    %399 = vst [vmem:[#allocation5 + $0x18] sm:$0xff] %v335
    %400 = vst [vmem:[#allocation5 + $0x20] sm:$0xff] %v336
    %401 = vst [vmem:[#allocation5 + $0x28] sm:$0xff] %v337
    %402 = vst [vmem:[#allocation5 + $0x30] sm:$0xff] %v338
    %403 = vst [vmem:[#allocation5 + $0x38] sm:$0xff] %v339
    %404 = vst [vmem:[#allocation5 + $0x40] sm:$0xff] %v340
    %405 = vst [vmem:[#allocation5 + $0x48] sm:$0xff] %v341
    %406 = vst [vmem:[#allocation5 + $0x50] sm:$0xff] %v342
    %407 = vst [vmem:[#allocation5 + $0x58] sm:$0xff] %v343
    %408 = vst [vmem:[#allocation5 + $0x60] sm:$0xff] %v344
    %409 = vst [vmem:[#allocation5 + $0x68] sm:$0xff] %v345
    %410 = vst [vmem:[#allocation5 + $0x70] sm:$0xff] %v346
    %411 = vst [vmem:[#allocation5 + $0x78] sm:$0xff] %v347
    %412 = vst [vmem:[#allocation5 + $0x80] sm:$0xff] %v348
    %413 = vst [vmem:[#allocation5 + $0x88] sm:$0xff] %v349
    %414 = vst [vmem:[#allocation5 + $0x90] sm:$0xff] %v350
    %415 = vst [vmem:[#allocation5 + $0x98] sm:$0xff] %v351
    %416 = vst [vmem:[#allocation5 + $0xa0] sm:$0xff] %v352
    %417 = vst [vmem:[#allocation5 + $0xa8] sm:$0xff] %v353
    %418 = vst [vmem:[#allocation5 + $0xb0] sm:$0xff] %v354
    %419 = vst [vmem:[#allocation5 + $0xb8] sm:$0xff] %v355
    %420 = vst [vmem:[#allocation5 + $0xc0] sm:$0xff] %v356
    %421 = vst [vmem:[#allocation5 + $0xc8] sm:$0xff] %v357
    %422 = vst [vmem:[#allocation5 + $0xd0] sm:$0xff] %v358
    %423 = vst [vmem:[#allocation5 + $0xd8] sm:$0xff] %v359
    %424 = vst [vmem:[#allocation5 + $0xe0] sm:$0xff] %v360
    %425 = vst [vmem:[#allocation5 + $0xe8] sm:$0xff] %v361
    %426 = vst [vmem:[#allocation5 + $0xf0] sm:$0xff] %v362
    %427 = vst [vmem:[#allocation5 + $0xf8] sm:$0xff] %v363
    %428 = vst [vmem:[#allocation5 + $0x100] sm:$0xff] %v364
    %429 = vst [vmem:[#allocation5 + $0x108] sm:$0xff] %v365
    %430 = vst [vmem:[#allocation5 + $0x110] sm:$0xff] %v366
    %431 = vst [vmem:[#allocation5 + $0x118] sm:$0xff] %v367
    %432 = vst [vmem:[#allocation5 + $0x120] sm:$0xff] %v368
    %433 = vst [vmem:[#allocation5 + $0x128] sm:$0xff] %v369
    %434 = vst [vmem:[#allocation5 + $0x130] sm:$0xff] %v370
    %435 = vst [vmem:[#allocation5 + $0x138] sm:$0xff] %v371
    %436 = vst [vmem:[#allocation5 + $0x140] sm:$0xff] %v372
    %437 = vst [vmem:[#allocation5 + $0x148] sm:$0xff] %v373
    %438 = vst [vmem:[#allocation5 + $0x150] sm:$0xff] %v374
    %439 = vst [vmem:[#allocation5 + $0x158] sm:$0xff] %v375
    %440 = vst [vmem:[#allocation5 + $0x160] sm:$0xff] %v376
    %441 = vst [vmem:[#allocation5 + $0x168] sm:$0xff] %v377
    %442 = vst [vmem:[#allocation5 + $0x170] sm:$0xff] %v378
    %443 = vst [vmem:[#allocation5 + $0x178] sm:$0xff] %v379
    %444 = vst [vmem:[#allocation5 + $0x180] sm:$0xff] %v380
    %445 = vst [vmem:[#allocation5 + $0x188] sm:$0xff] %v381
    %446 = vst [vmem:[#allocation5 + $0x190] sm:$0xff] %v382
    %447 = vst [vmem:[#allocation5 + $0x198] sm:$0xff] %v383
    %448 = vst [vmem:[#allocation5 + $0x1a0] sm:$0xff] %v384
    %449 = vst [vmem:[#allocation5 + $0x1a8] sm:$0xff] %v385
    %450 = vst [vmem:[#allocation5 + $0x1b0] sm:$0xff] %v386
    %451 = vst [vmem:[#allocation5 + $0x1b8] sm:$0xff] %v387
    %452 = vst [vmem:[#allocation5 + $0x1c0] sm:$0xff] %v388
    %453 = vst [vmem:[#allocation5 + $0x1c8] sm:$0xff] %v389
    %454 = vst [vmem:[#allocation5 + $0x1d0] sm:$0xff] %v390
    %455 = vst [vmem:[#allocation5 + $0x1d8] sm:$0xff] %v391
    %456 = vst [vmem:[#allocation5 + $0x1e0] sm:$0xff] %v392
    %457 = vst [vmem:[#allocation5 + $0x1e8] sm:$0xff] %v393
    %458 = vst [vmem:[#allocation5 + $0x1f0] sm:$0xff] %v394
    %459 = vst [vmem:[#allocation5 + $0x1f8] sm:$0xff] %v395
    // Predicated region
    $region14: #{tpu_custom_call.1} parent=1 // pred_check
      _
    $region15: #{tpu_custom_call.1} parent=1 // pred_check_branch
      %461 = sbr.rel (0) target = $region17
    $region16: #{tpu_custom_call.1} parent=1 // pred_region
      %s463 = ssub.s32 8192, 8192
      %464 = vsyncadd [#allocation4], %s463
      %s465 = sshll.u32 [#allocation5], 4
      %s466 = int_to_ptr.vmem [resolvable:$true] %s465
      %471 = dma.vmem_to_hbm [thread:$0]  %s466, 8192, %s2, [#allocation4], 2048, 2048, 128
    $region17: #{tpu_custom_call.1} parent=1 // pred_fallthru
      _
    // Predicated region
    $region18: #{tpu_custom_call.1} parent=1 // pred_check
      _
    $region19: #{tpu_custom_call.1} parent=1 // pred_check_branch
      %473 = sbr.rel (0) target = $region21
    $region20: #{tpu_custom_call.1} parent=1 // pred_region
      %474 = dma.done [#allocation4], 8192
    $region21: #{tpu_custom_call.1} parent=1 // pred_fallthru
      _
    %475 = vsyncpa [#allocation3], 1
    %476 = vsyncpa [#allocation4], 1

</llo_original>
